<compile_context>
chip_gen: v7x
topology: tpu7x:2x2x1
jax: 0.10.0
libtpu: 0.0.40
codegen_flags: <defaults>
</compile_context>

<pallas_src>
import functools
import math

import numpy as np

import jax
import jax.numpy as jnp
from jax.experimental import pallas as pl
from jax.experimental.pallas import tpu as pltpu


_MAX_PLANES_PER_STEP = 256      # hard cap on planes per grid step


def _val2list(x, repeat_time=1):
    if isinstance(x, (list, tuple)):
        return list(x)
    return [x for _ in range(repeat_time)]


def _cdiv(a, b):
    return -(-a // b)


def _round_up(v, m):
    return _cdiv(v, m) * m


@functools.lru_cache(maxsize=1)
def _tpu_vmem_policy():
    """(vmem_limit_bytes, block_budget_bytes, min_grid_steps), generation-aware."""
    mib = 1024 * 1024
    try:
        cap = int(pltpu.get_tpu_info().vmem_capacity_bytes)
    except Exception:
        cap = 64 * mib  # conservative (v7x-class) fallback if the query fails
    if cap >= 100 * mib:
        # v5e / v6e: 128 MiB VMEM, single TensorCore -> big blocks, no step reservation.
        return 104 * mib, 80 * mib, 1
    # v7x-class: 64 MiB VMEM per TC, 2 TCs -> tighter budget, keep >= 4 grid steps
    # so the "parallel" grid axis can be sharded across cores.
    return 44 * mib, 22 * mib, 4


@functools.lru_cache(maxsize=None)
def _interp_weight_matrix(mode: str, in_size: int, out_size: int, scale: float,
                          align_corners: bool) -> np.ndarray:
    """Dense (out_size, in_size) matrix reproducing PyTorch's 1-D upsample weights."""
    i = np.arange(out_size, dtype=np.float32)
    if align_corners:
        if out_size > 1:
            src = i * (float(in_size - 1) / float(out_size - 1))
        else:
            src = np.zeros_like(i)
    else:
        src = (i + 0.5) * float(scale) - 0.5

    W = np.zeros((out_size, in_size), dtype=np.float32)
    rows = np.arange(out_size)

    if mode == "bicubic":
        A = -0.75  # PyTorch's cubic convolution constant

        x_floor = np.floor(src)
        t = (src - x_floor).astype(np.float32)

        def cc1(x):  # |x| <= 1
            return ((A + 2.0) * x - (A + 3.0)) * x * x + 1.0

        def cc2(x):  # 1 < |x| < 2
            return ((A * x - 5.0 * A) * x + 8.0 * A) * x - 4.0 * A

        # 4 taps at offsets -1, 0, +1, +2 from floor(src)
        w = np.stack([cc2(t + 1.0), cc1(t), cc1(1.0 - t), cc2(2.0 - t)], axis=1)
        idx = x_floor.astype(np.int64)[:, None] + np.arange(-1, 3)[None, :]
        idx = np.clip(idx, 0, in_size - 1)           # border clamping, like PyTorch
        np.add.at(W, (rows[:, None], idx), w)        # accumulate duplicated clamped taps
    elif mode == "bilinear":
        src = np.maximum(src, 0.0)
        idx0 = np.clip(np.floor(src).astype(np.int64), 0, in_size - 1)
        lam = (src - idx0).astype(np.float32)
        idx1 = np.minimum(idx0 + 1, in_size - 1)
        np.add.at(W, (rows, idx0), 1.0 - lam)
        np.add.at(W, (rows, idx1), lam)
    else:
        # TODO(synk): 'nearest'/'area' weight matrices not implemented here.
        raise NotImplementedError(f"resize(mode={mode}) not implemented in Pallas port.")
    return W


def _choose_tiling(nc, h_pad, w_in, h_out, w_out, itemsize, cdt_size, budget, min_steps):
    """Pick (planes-per-step B, lane-pack factor G); prefer B | nc to avoid HBM pads."""
    r8 = lambda v: _round_up(v, 8)
    r128 = lambda v: _round_up(v, 128)

    # Lane-packing factor: pack G planes so matmul N-dim / intermediates see >= 128 lanes.
    g = max(1, min(_cdiv(128, w_out), nc, 16))

    def per_plane_bytes(g):
        # double-buffered in/out blocks + in-kernel f32 width result + cdt scratch + x copy
        io = 2 * (r8(h_pad) * r128(w_in) + r8(h_out) * r128(w_out)) * itemsize
        lane = _cdiv(r128(g * w_out), g)
        interm = r8(h_pad) * (r128(w_in) * cdt_size + lane * (4 + cdt_size))
        return io + interm

    def weight_bytes(g):
        return 2 * (r8(h_out) * r128(h_pad) + g * r8(w_in) * r128(g * w_out)) * cdt_size

    avail = max(budget - weight_bytes(g), per_plane_bytes(g))
    b_max = max(1, int(avail // per_plane_bytes(g)))
    b_max = min(b_max, nc, _MAX_PLANES_PER_STEP)
    if min_steps > 1 and nc >= min_steps:
        # Multi-TensorCore part: leave a few grid steps for core sharding.
        b_max = min(b_max, max(1, _cdiv(nc, min_steps)))
    g = max(1, min(g, b_max))

    # Largest multiple of g <= b_max that divides nc (no padding needed).
    b_cap = (b_max // g) * g
    b = b_cap
    while b >= g and nc % b != 0:
        b -= g
    if b < g or b * 8 < b_cap:
        # No reasonable divisor: fall back to padding the plane axis.
        b = b_cap
    return b, g


def _upsample_kernel(wh_ref, wwt_ref, x_ref, o_ref, t_ref):
    # wh_ref : (H_out, Hp)            resident height weights (Hp = H_in rounded up to 8)
    # wwt_ref: (G, W_in, G*W_out)     row-block g of a block-diagonal Ww^T (zeros elsewhere)
    # x_ref  : (B, Hp, W_in)          o_ref: (B, H_out, W_out)
    # t_ref  : (B//G, Hp, G*W_out)    scratch (compute dtype)
    B, Hp, W_in = x_ref.shape
    _, H_out, W_out = o_ref.shape
    G = wwt_ref.shape[0]
    Bg = B // G
    cdt = wh_ref.dtype

    # --- Width pass ----------------------------------------------------------
    # G plane-groups are packed into the lane dimension of one lane-dense
    # (M = Bg*Hp, N = G*W_out) f32 accumulator.  wwt_ref[g] maps plane-group g
    # into lane block g, so no HBM relayout / VMEM concat is needed: just G MXU
    # matmuls summed in f32 (same total MAC count as a single block-diag matmul).
    def group_dot(g):
        xg = x_ref[g * Bg:(g + 1) * Bg].astype(cdt).reshape(Bg * Hp, W_in)
        return jnp.dot(xg, wwt_ref[g], preferred_element_type=jnp.float32)

    t = group_dot(0)
    for g in range(1, G):
        t = t + group_dot(g)
    t_ref[...] = t.reshape(Bg, Hp, G * W_out).astype(t_ref.dtype)

    # --- Height pass ---------------------------------------------------------
    # Wh stays resident (no per-plane broadcast copy); one MXU matmul per packed
    # plane-group, written straight into the output block.
    wh = wh_ref[...]

    def height_pass(b, carry):
        ob = jnp.dot(wh, t_ref[b], preferred_element_type=jnp.float32)
        ob = ob.astype(o_ref.dtype)
        for g in range(G):
            # TODO(synk): W_out < 128 keeps these stores masked (narrow lanes); a
            # channels-last output layout would make them lane-dense.
            o_ref[g * Bg + b] = ob[:, g * W_out:(g + 1) * W_out]
        return carry

    jax.lax.fori_loop(0, Bg, height_pass, 0, unroll=min(Bg, 8))


def _upsample_pallas(x, mode, h_out, w_out, scale_h, scale_w, align_corners, cdt):
    """x: (N, C, H_in, W_in) -> (N, C, h_out, w_out) via two separable MXU passes."""
    N, C, h_in, w_in = x.shape
    nc = N * C
    h_pad = _round_up(h_in, 8)   # keeps the in-kernel leading-dim reshape layout-preserving

    vmem_limit, budget, min_steps = _tpu_vmem_policy()
    B, G = _choose_tiling(nc, h_pad, w_in, h_out, w_out,
                          jnp.dtype(x.dtype).itemsize, jnp.dtype(cdt).itemsize,
                          budget, min_steps)
    Bg = B // G
    nc_pad = _round_up(nc, B)

    # Host-built, memoized interpolation weights.
    wh_np = _interp_weight_matrix(mode, h_in, h_out, scale_h, align_corners)   # (h_out, h_in)
    if h_pad != h_in:
        wh_np = np.pad(wh_np, ((0, 0), (0, h_pad - h_in)))      # zero cols for padded rows
    ww_np = _interp_weight_matrix(mode, w_in, w_out, scale_w, align_corners)   # (w_out, w_in)
    wwt_np = np.zeros((G, w_in, G * w_out), dtype=np.float32)
    for g in range(G):
        wwt_np[g, :, g * w_out:(g + 1) * w_out] = ww_np.T

    wh = jnp.asarray(wh_np, dtype=cdt)
    wwt = jnp.asarray(wwt_np, dtype=cdt)

    x_flat = x.reshape(nc, h_in, w_in)
    if nc_pad != nc or h_pad != h_in:
        # Rare fallback (no good divisor-B, or H_in % 8 != 0): one extra HBM pass over x.
        # TODO(synk): handle the ragged tail block inside the kernel via scalar prefetch.
        x_flat = jnp.pad(x_flat, ((0, nc_pad - nc), (0, h_pad - h_in), (0, 0)))

    out_flat = pl.pallas_call(
        _upsample_kernel,
        out_shape=jax.ShapeDtypeStruct((nc_pad, h_out, w_out), x.dtype),
        grid_spec=pltpu.PrefetchScalarGridSpec(
            num_scalar_prefetch=0,
            grid=(nc_pad // B,),
            in_specs=[
                pl.BlockSpec((h_out, h_pad), lambda i: (0, 0)),          # resident weights
                pl.BlockSpec((G, w_in, G * w_out), lambda i: (0, 0, 0)),
                pl.BlockSpec((B, h_pad, w_in), lambda i: (i, 0, 0)),
            ],
            out_specs=pl.BlockSpec((B, h_out, w_out), lambda i: (i, 0, 0)),
            scratch_shapes=[pltpu.VMEM((Bg, h_pad, G * w_out), cdt)],
        ),
        compiler_params=pltpu.CompilerParams(
            dimension_semantics=("parallel",),
            vmem_limit_bytes=vmem_limit,
        ),
    )(wh, wwt, x_flat)

    if nc_pad != nc:
        out_flat = out_flat[:nc]
    return out_flat.reshape(N, C, h_out, w_out)


class UpSampleLayer:
    """JAX/Pallas port of the PyTorch UpSampleLayer (bicubic / bilinear via matmuls)."""

    def __init__(self, mode="bicubic", size=None, factor=2, align_corners=False,
                 use_bf16_mxu=None):
        # use_bf16_mxu: True  -> always bf16 MXU operands (f32 accumulation)
        #               False -> always f32 operands
        #               None  -> auto: bf16 operands only when the input is bf16
        if mode not in {"bicubic", "bilinear"}:
            # TODO(synk): 'nearest'/'area' resize modes not implemented in the Pallas port.
            raise NotImplementedError(f"UpSampleLayer(mode={mode}) not implemented in Pallas port.")
        self.mode = mode
        self.size = tuple(int(s) for s in _val2list(size, 2)) if size is not None else None
        self.factor = None if self.size is not None else [float(f) for f in _val2list(factor, 2)]
        self.align_corners = bool(align_corners)
        self.use_bf16_mxu = use_bf16_mxu

    def __call__(self, x: jnp.ndarray) -> jnp.ndarray:
        assert x.ndim == 4, "expected NCHW input"
        if ((self.size is not None and tuple(x.shape[-2:]) == self.size)
                or (self.size is None and all(f == 1.0 for f in self.factor))):
            return x
        _, _, h_in, w_in = x.shape
        if self.size is not None:
            h_out, w_out = self.size
            scale_h = float(h_in) / float(h_out)
            scale_w = float(w_in) / float(w_out)
        else:
            fh, fw = self.factor
            h_out = int(math.floor(h_in * fh))
            w_out = int(math.floor(w_in * fw))
            # PyTorch uses 1/scale_factor directly when scale_factor is supplied.
            scale_h = 1.0 / fh
            scale_w = 1.0 / fw

        if self.use_bf16_mxu is None:
            use_bf16 = (x.dtype == jnp.bfloat16)
        else:
            use_bf16 = bool(self.use_bf16_mxu)
        cdt = jnp.bfloat16 if use_bf16 else jnp.float32
        return _upsample_pallas(x, self.mode, h_out, w_out, scale_h, scale_w,
                                self.align_corners, cdt)


if __name__ == "__main__":
    # Case 1: bicubic x2 upsample, f32 (the module's default config).
    x = jax.random.normal(jax.random.PRNGKey(0), (2, 4, 16, 16), dtype=jnp.float32)
    layer = UpSampleLayer(mode="bicubic", factor=2, align_corners=False)
    y = jax.block_until_ready(layer(x))
    assert y.shape == (2, 4, 32, 32), y.shape
    assert y.dtype == x.dtype, y.dtype

    wh64 = _interp_weight_matrix("bicubic", 16, 32, 0.5, False).astype(np.float64)
    ww64 = _interp_weight_matrix("bicubic", 16, 32, 0.5, False).astype(np.float64)
    ref = np.einsum("oh,nchw,vw->ncov", wh64, np.asarray(x, np.float64), ww64)
    err = float(np.max(np.abs(np.asarray(y, np.float64) - ref)))
    assert np.allclose(np.asarray(y, np.float64), ref, atol=2e-2, rtol=2e-2), err

    # Case 2: bilinear x2, align_corners=True, odd spatial size (H_in % 8 != 0 path).
    x2 = jax.random.normal(jax.random.PRNGKey(1), (2, 3, 7, 7), dtype=jnp.float32)
    layer2 = UpSampleLayer(mode="bilinear", factor=2, align_corners=True)
    y2 = jax.block_until_ready(layer2(x2))
    assert y2.shape == (2, 3, 14, 14), y2.shape
    wh2 = _interp_weight_matrix("bilinear", 7, 14, 0.5, True).astype(np.float64)
    ref2 = np.einsum("oh,nchw,vw->ncov", wh2, np.asarray(x2, np.float64), wh2)
    err2 = float(np.max(np.abs(np.asarray(y2, np.float64) - ref2)))
    assert np.allclose(np.asarray(y2, np.float64), ref2, atol=2e-2, rtol=2e-2), err2

    # Case 3: bf16 activations -> bf16 MXU operands with f32 accumulation (auto path).
    y3 = jax.block_until_ready(layer(x.astype(jnp.bfloat16)))
    assert y3.dtype == jnp.bfloat16, y3.dtype
    err3 = float(np.max(np.abs(np.asarray(y3, np.float64) - ref)))
    assert np.allclose(np.asarray(y3, np.float64), ref, atol=1e-1, rtol=1e-1), err3

    print("KERNEL_OK")
</pallas_src>

<mosaic_0001>
module attributes {stable_mosaic.version = 11 : i64} {
  func.func @_upsample_kernel(%arg0: i32, %arg1: memref<32x16xf32, #tpu.memory_space<vmem>>, %arg2: memref<2x16x64xf32, #tpu.memory_space<vmem>>, %arg3: memref<2x16x16xf32, #tpu.memory_space<vmem>>, %arg4: memref<2x32x32xf32, #tpu.memory_space<vmem>>, %arg5: memref<1x16x64xf32, #tpu.memory_space<vmem>>) attributes {dimension_semantics = [#tpu.dimension_semantics<parallel>], iteration_bounds = array<i64: 4>, scalar_prefetch = 0 : i64, scratch_operands = 1 : i64, tpu.core_type = #tpu.core_type<tc>, window_params = [{pipeline_mode = #tpu.pipeline_mode<synchronous>, transform_indices = @transform_0, window_bounds = array<i64: 32, 16>}, {pipeline_mode = #tpu.pipeline_mode<synchronous>, transform_indices = @transform_1, window_bounds = array<i64: 2, 16, 64>}, {transform_indices = @transform_2, window_bounds = array<i64: 2, 16, 16>}, {transform_indices = @transform_3, window_bounds = array<i64: 2, 32, 32>}]} {
    %c0 = arith.constant 0 : index
    %c0_0 = arith.constant 0 : index
    %c0_1 = arith.constant 0 : index
    %0 = vector.load %arg3[%c0, %c0_0, %c0_1] : memref<2x16x16xf32, #tpu.memory_space<vmem>>, vector<1x16x16xf32>
    %1 = vector.shape_cast %0 : vector<1x16x16xf32> to vector<16x16xf32>
    %c0_2 = arith.constant 0 : index
    %c0_3 = arith.constant 0 : index
    %c0_4 = arith.constant 0 : index
    %2 = vector.load %arg2[%c0_2, %c0_3, %c0_4] : memref<2x16x64xf32, #tpu.memory_space<vmem>>, vector<1x16x64xf32>
    %3 = vector.shape_cast %2 : vector<1x16x64xf32> to vector<16x64xf32>
    %cst = arith.constant dense<0.000000e+00> : vector<16x64xf32>
    %4 = tpu.matmul %1, %3, %cst {dimension_numbers = #tpu.dot_dimension_numbers<[1], [0], [0], [1], [0, 0, 1, 1], [], []>} : vector<16x16xf32>, vector<16x64xf32>, vector<16x64xf32> -> vector<16x64xf32>
    %c1 = arith.constant 1 : index
    %c0_5 = arith.constant 0 : index
    %c0_6 = arith.constant 0 : index
    %5 = vector.load %arg3[%c1, %c0_5, %c0_6] : memref<2x16x16xf32, #tpu.memory_space<vmem>>, vector<1x16x16xf32>
    %6 = vector.shape_cast %5 : vector<1x16x16xf32> to vector<16x16xf32>
    %c1_7 = arith.constant 1 : index
    %c0_8 = arith.constant 0 : index
    %c0_9 = arith.constant 0 : index
    %7 = vector.load %arg2[%c1_7, %c0_8, %c0_9] : memref<2x16x64xf32, #tpu.memory_space<vmem>>, vector<1x16x64xf32>
    %8 = vector.shape_cast %7 : vector<1x16x64xf32> to vector<16x64xf32>
    %cst_10 = arith.constant dense<0.000000e+00> : vector<16x64xf32>
    %9 = tpu.matmul %6, %8, %cst_10 {dimension_numbers = #tpu.dot_dimension_numbers<[1], [0], [0], [1], [0, 0, 1, 1], [], []>} : vector<16x16xf32>, vector<16x64xf32>, vector<16x64xf32> -> vector<16x64xf32>
    %10 = arith.addf %4, %9 : vector<16x64xf32>
    %11 = vector.shape_cast %10 : vector<16x64xf32> to vector<1x16x64xf32>
    %c0_11 = arith.constant 0 : index
    %c0_12 = arith.constant 0 : index
    %c0_13 = arith.constant 0 : index
    %12 = vector.load %arg5[%c0_11, %c0_12, %c0_13] : memref<1x16x64xf32, #tpu.memory_space<vmem>>, vector<1x16x64xf32>
    tpu.vector_store %arg5[%c0_11, %c0_12, %c0_13], %11 {strides = array<i32>} : memref<1x16x64xf32, #tpu.memory_space<vmem>>, vector<1x16x64xf32>,
    %c0_14 = arith.constant 0 : index
    %c0_15 = arith.constant 0 : index
    %13 = vector.load %arg1[%c0_14, %c0_15] : memref<32x16xf32, #tpu.memory_space<vmem>>, vector<32x16xf32>
    %c0_i32 = arith.constant 0 : i32
    %14 = arith.index_cast %c0_i32 : i32 to index
    %c0_16 = arith.constant 0 : index
    %c0_17 = arith.constant 0 : index
    %15 = vector.load %arg5[%14, %c0_16, %c0_17] : memref<1x16x64xf32, #tpu.memory_space<vmem>>, vector<1x16x64xf32>
    %16 = vector.shape_cast %15 : vector<1x16x64xf32> to vector<16x64xf32>
    %cst_18 = arith.constant dense<0.000000e+00> : vector<32x64xf32>
    %17 = tpu.matmul %13, %16, %cst_18 {dimension_numbers = #tpu.dot_dimension_numbers<[1], [0], [0], [1], [0, 0, 1, 1], [], []>} : vector<32x16xf32>, vector<16x64xf32>, vector<32x64xf32> -> vector<32x64xf32>
    %18 = vector.extract_strided_slice %17 {offsets = [0, 0], sizes = [32, 32], strides = [1, 1]} : vector<32x64xf32> to vector<32x32xf32>
    %c0_i32_19 = arith.constant 0 : i32
    %19 = arith.addi %c0_i32_19, %c0_i32 : i32
    %20 = arith.index_cast %19 : i32 to index
    %c0_20 = arith.constant 0 : index
    %c0_21 = arith.constant 0 : index
    %21 = vector.load %arg4[%20, %c0_20, %c0_21] : memref<2x32x32xf32, #tpu.memory_space<vmem>>, vector<1x32x32xf32>
    %22 = vector.shape_cast %21 : vector<1x32x32xf32> to vector<32x32xf32>
    %23 = vector.shape_cast %18 : vector<32x32xf32> to vector<1x32x32xf32>
    tpu.vector_store %arg4[%20, %c0_20, %c0_21], %23 {strides = array<i32>} : memref<2x32x32xf32, #tpu.memory_space<vmem>>, vector<1x32x32xf32>,
    %24 = vector.extract_strided_slice %17 {offsets = [0, 32], sizes = [32, 32], strides = [1, 1]} : vector<32x64xf32> to vector<32x32xf32>
    %c1_i32 = arith.constant 1 : i32
    %25 = arith.addi %c1_i32, %c0_i32 : i32
    %26 = arith.index_cast %25 : i32 to index
    %c0_22 = arith.constant 0 : index
    %c0_23 = arith.constant 0 : index
    %27 = vector.load %arg4[%26, %c0_22, %c0_23] : memref<2x32x32xf32, #tpu.memory_space<vmem>>, vector<1x32x32xf32>
    %28 = vector.shape_cast %27 : vector<1x32x32xf32> to vector<32x32xf32>
    %29 = vector.shape_cast %24 : vector<32x32xf32> to vector<1x32x32xf32>
    tpu.vector_store %arg4[%26, %c0_22, %c0_23], %29 {strides = array<i32>} : memref<2x32x32xf32, #tpu.memory_space<vmem>>, vector<1x32x32xf32>,
    %c1_i32_24 = arith.constant 1 : i32
    return
  }
  func.func @transform_0(%arg0: i32) -> (i32, i32) {
    %c0_i32 = arith.constant 0 : i32
    %c0_i32_0 = arith.constant 0 : i32
    %c0_i32_1 = arith.constant 0 : i32
    return %c0_i32, %c0_i32_0 : i32, i32
  }
  func.func @transform_1(%arg0: i32) -> (i32, i32, i32) {
    %c0_i32 = arith.constant 0 : i32
    %c0_i32_0 = arith.constant 0 : i32
    %c0_i32_1 = arith.constant 0 : i32
    %c0_i32_2 = arith.constant 0 : i32
    return %c0_i32, %c0_i32_0, %c0_i32_1 : i32, i32, i32
  }
  func.func @transform_2(%arg0: i32) -> (i32, i32, i32) {
    %c0_i32 = arith.constant 0 : i32
    %c0_i32_0 = arith.constant 0 : i32
    %c0_i32_1 = arith.constant 0 : i32
    return %arg0, %c0_i32, %c0_i32_0 : i32, i32, i32
  }
  func.func @transform_3(%arg0: i32) -> (i32, i32, i32) {
    %c0_i32 = arith.constant 0 : i32
    %c0_i32_0 = arith.constant 0 : i32
    %c0_i32_1 = arith.constant 0 : i32
    return %arg0, %c0_i32, %c0_i32_0 : i32, i32, i32
  }
}

</mosaic_0001>

<llo_original>
// kernel: tpu_custom_call.1
$region0: #{tpu_custom_call.1}
  #allocation0 [shape = 'u32[]', space=smem, size = 0x4, offset = 0x4, fixed_abs, tag = 'smem constant byte address 0x4 - core index']
  #allocation1 [shape = 'u32[144,128]{1,0:T(1,128)}', space=vmem, size = 0x12000, scoped, tag = 'internal scratch']
  #allocation2 [shape = 'f32[1,16,64]{2,1,0:T(8,128)}', space=vmem, size = 0x2000, scoped, tag = 'scratch operand']
  %s0 = inlined_call_operand.vmem [shape: f32[32,16], index: 0, kind: input, shape index: {}]
  %s1 = inlined_call_operand.vmem [shape: f32[2,16,64], index: 1, kind: input, shape index: {}]
  %s2 = inlined_call_operand.hbm [shape: f32[8,16,16], index: 2, kind: input, shape index: {}]
  %s3 = inlined_call_operand.hbm [shape: f32[8,32,32], index: 3, kind: output, shape index: {}]
  %s4 = sld [smem:[#allocation0]]
  $region49: #{tpu_custom_call.1} parent=0
    _
  %s6 = ssub.s32 1, %s4
  %s7 = scalar_select 0, %s6, %s4
  $region1: #{tpu_custom_call.1} parent=0
    #allocation3 [shape = 'u8[32768]{0}', space=vmem, size = 0x8000, scoped, tag = 'input window, operand 2']
    #allocation4 [shape = 's32[2]{0}', space=sflag, size = 0x8, scoped, tag = 'scoped memory for tpu_custom_call.1']
    #allocation5 [shape = 's32[2]{0}', space=sflag, size = 0x8, scoped, tag = 'scoped memory for tpu_custom_call.1']
    #allocation6 [shape = 'u8[65536]{0}', space=vmem, size = 0x10000, scoped, tag = 'output window, operand 0']
    %8 = vsyncpa [#allocation4], 0
    %s9 = scalar_lea.sflag [#allocation4], 1
    %10 = vsyncpa %s9, 0
    %11 = vsyncpa [#allocation5], 0
    %s12 = scalar_lea.sflag [#allocation5], 1
    %13 = vsyncpa %s12, 0
    loop: start=0, step=1, limit=6
    $region2: #{tpu_custom_call.1} parent=1 // loop_pre_header
      _
    $region3: #{tpu_custom_call.1} parent=1 // loop_header
      %s15 = sphi 0, %s19
      %p16 = scmp.ge.s32.totalorder %s15, 6
      %s23 = sphi 0, %s23
      %s25 = sphi 0, %s23
      %s26 = sphi 0, %s25
      %s40 = sphi 0, %s26
      %s44 = sphi 0, %s44
      %s46 = sphi 0, %s44
      %s47 = sphi 0, %s46
      %s61 = sphi 0, %s47
      %s67 = sphi 0, %s69
      %s70 = sphi 0, %s67
      %s71 = sphi 0, %s70
      %s87 = sphi 0, %s71
      %s93 = sphi 0, %s95
      %s96 = sphi 0, %s93
      %s97 = sphi 0, %s96
      %s113 = sphi 0, %s97
    $region4: #{tpu_custom_call.1} parent=1 // loop_header_branch
      %18 = sbr.rel (%p16) target = $region8
    $region5: #{tpu_custom_call.1} parent=1 // loop_body
      %s20 = ssub.s32 %s15, 1
      %s21 = ssub.s32 %s15, 2
      %s22 = sadd.s32 %s15, 1
      %s24 = sadd.s32 %s23, 1
      %p27 = scmp.eq.s32.totalorder %s15, 3
      %p28 = scmp.ne.s32.totalorder %s23, %s25
      %p29 = scmp.eq.s32.totalorder %s15, 0
      %p30 = por %p28, %p29
      %p31 = scmp.ne.s32.totalorder %s23, %s25
      %p32 = scmp.eq.s32.totalorder %s20, 3
      %p33 = por %p31, %p32
      %p34 = scmp.ne.s32.totalorder %s25, %s26
      %p35 = scmp.eq.s32.totalorder %s20, 0
      %p36 = por %p34, %p35
      %p37 = scmp.ne.s32.totalorder %s25, %s26
      %p38 = scmp.eq.s32.totalorder %s21, 3
      %p39 = por %p37, %p38
      %p41 = scmp.ne.s32.totalorder %s26, %s40
      %p42 = scmp.eq.s32.totalorder %s21, 0
      %p43 = por %p41, %p42
      %s45 = sadd.s32 %s44, 1
      %p48 = scmp.eq.s32.totalorder %s15, 3
      %p49 = scmp.ne.s32.totalorder %s44, %s46
      %p50 = scmp.eq.s32.totalorder %s15, 0
      %p51 = por %p49, %p50
      %p52 = scmp.ne.s32.totalorder %s44, %s46
      %p53 = scmp.eq.s32.totalorder %s20, 3
      %p54 = por %p52, %p53
      %p55 = scmp.ne.s32.totalorder %s46, %s47
      %p56 = scmp.eq.s32.totalorder %s20, 0
      %p57 = por %p55, %p56
      %p58 = scmp.ne.s32.totalorder %s46, %s47
      %p59 = scmp.eq.s32.totalorder %s21, 3
      %p60 = por %p58, %p59
      %p62 = scmp.ne.s32.totalorder %s47, %s61
      %p63 = scmp.eq.s32.totalorder %s21, 0
      %p64 = por %p62, %p63
      %s65 = ssub.s32 %s15, %s22
      %p66 = scmp.eq.s32.totalorder %s65, 0
      %s68 = sadd.s32 %s67, 1
      %s69 = scalar_select %p66, %s67, %s68
      %p72 = pneg %p66
      %p73 = scmp.eq.s32.totalorder %s15, 3
      %p74 = por %p72, %p73
      %p75 = scmp.ne.s32.totalorder %s67, %s70
      %p76 = scmp.eq.s32.totalorder %s15, 0
      %p77 = por %p75, %p76
      %p78 = scmp.ne.s32.totalorder %s67, %s70
      %p79 = scmp.eq.s32.totalorder %s20, 3
      %p80 = por %p78, %p79
      %p81 = scmp.ne.s32.totalorder %s70, %s71
      %p82 = scmp.eq.s32.totalorder %s20, 0
      %p83 = por %p81, %p82
      %p84 = scmp.ne.s32.totalorder %s70, %s71
      %p85 = scmp.eq.s32.totalorder %s21, 3
      %p86 = por %p84, %p85
      %p88 = scmp.ne.s32.totalorder %s71, %s87
      %p89 = scmp.eq.s32.totalorder %s21, 0
      %p90 = por %p88, %p89
      %s91 = ssub.s32 %s15, %s22
      %p92 = scmp.eq.s32.totalorder %s91, 0
      %s94 = sadd.s32 %s93, 1
      %s95 = scalar_select %p92, %s93, %s94
      %p98 = pneg %p92
      %p99 = scmp.eq.s32.totalorder %s15, 3
      %p100 = por %p98, %p99
      %p101 = scmp.ne.s32.totalorder %s93, %s96
      %p102 = scmp.eq.s32.totalorder %s15, 0
      %p103 = por %p101, %p102
      %p104 = scmp.ne.s32.totalorder %s93, %s96
      %p105 = scmp.eq.s32.totalorder %s20, 3
      %p106 = por %p104, %p105
      %p107 = scmp.ne.s32.totalorder %s96, %s97
      %p108 = scmp.eq.s32.totalorder %s20, 0
      %p109 = por %p107, %p108
      %p110 = scmp.ne.s32.totalorder %s96, %s97
      %p111 = scmp.eq.s32.totalorder %s21, 3
      %p112 = por %p110, %p111
      %p114 = scmp.ne.s32.totalorder %s97, %s113
      %p115 = scmp.eq.s32.totalorder %s21, 0
      %p116 = por %p114, %p115
      %p117 = scmp.le.s32.totalorder 1, %s15
      %p118 = scmp.lt.s32.totalorder %s15, 5
      %p119 = pnand %p117, %p118
      %p120 = pneg %p119
      // Predicated region
      $region9: #{tpu_custom_call.1} parent=5 // pred_check
        _
      $region10: #{tpu_custom_call.1} parent=5 // pred_check_branch
        %122 = sbr.rel (%p119) target = $region12
      $region11: #{tpu_custom_call.1} parent=5 // pred_region
        %s123 = ssub.s32 %s15, 1
        // Predicated region
        $region13: #{tpu_custom_call.1} parent=11 // pred_check
          %p124 = pneg %p36
        $region14: #{tpu_custom_call.1} parent=11 // pred_check_branch
          %126 = sbr.rel (%p124) target = $region16
        $region15: #{tpu_custom_call.1} parent=11 // pred_region
          _
        $region16: #{tpu_custom_call.1} parent=11 // pred_fallthru
          _
        // Predicated region
        $region17: #{tpu_custom_call.1} parent=11 // pred_check
          %p127 = pneg %p57
        $region18: #{tpu_custom_call.1} parent=11 // pred_check_branch
          %129 = sbr.rel (%p127) target = $region20
        $region19: #{tpu_custom_call.1} parent=11 // pred_region
          _
        $region20: #{tpu_custom_call.1} parent=11 // pred_fallthru
          _
      $region12: #{tpu_custom_call.1} parent=5 // pred_fallthru
        _
      %p130 = scmp.lt.s32.totalorder %s15, 4
      // Predicated region
      $region21: #{tpu_custom_call.1} parent=5 // pred_check
        %p131 = pneg %p130
      $region22: #{tpu_custom_call.1} parent=5 // pred_check_branch
        %133 = sbr.rel (%p131) target = $region24
      $region23: #{tpu_custom_call.1} parent=5 // pred_region
        // Predicated region
        $region25: #{tpu_custom_call.1} parent=23 // pred_check
          %p134 = pneg %p77
        $region26: #{tpu_custom_call.1} parent=23 // pred_check_branch
          %136 = sbr.rel (%p134) target = $region28
        $region27: #{tpu_custom_call.1} parent=23 // pred_region
          %s137 = sand.u32 %s67, 1
          %s138 = scalar_lea.sflag [#allocation4], %s137
          %s139 = sand.u32 %s67, 1
          %s140 = smul.addr %s139, 32
          %s141 = scalar_lea.vmem [#allocation3], %s140
          %s142 = smul.u32 2, %s15
          %s144 = ssub.s32 512, 512
          %145 = vsyncadd %s138, %s144
          %s146 = smul.addr %s142, 2
          %s147 = smul.addr %s146, 128
          %s148 = scalar_lea.hbm %s2, %s147
          %s149 = sshll.u32 %s141, 4
          %s150 = int_to_ptr.vmem [resolvable:$true] %s149
          %155 = dma.hbm_to_vmem [thread:$0]  %s148, 512, %s150, %s138, 128, 128, 8
        $region28: #{tpu_custom_call.1} parent=23 // pred_fallthru
          _
      $region24: #{tpu_custom_call.1} parent=5 // pred_fallthru
        _
      %p156 = scmp.le.s32.totalorder 1, %s15
      %p157 = scmp.lt.s32.totalorder %s15, 5
      %p158 = pnand %p156, %p157
      %p159 = pneg %p158
      // Predicated region
      $region29: #{tpu_custom_call.1} parent=5 // pred_check
        _
      $region30: #{tpu_custom_call.1} parent=5 // pred_check_branch
        %161 = sbr.rel (%p158) target = $region32
      $region31: #{tpu_custom_call.1} parent=5 // pred_region
        %s162 = ssub.s32 %s15, 1
        %s163 = sand.u32 %s70, 1
        %s164 = scalar_lea.sflag [#allocation4], %s163
        %s165 = sand.u32 %s70, 1
        %s166 = smul.addr %s165, 32
        %s167 = scalar_lea.vmem [#allocation3], %s166
        // Predicated region
        $region33: #{tpu_custom_call.1} parent=31 // pred_check
          %p168 = pneg %p83
        $region34: #{tpu_custom_call.1} parent=31 // pred_check_branch
          %170 = sbr.rel (%p168) target = $region36
        $region35: #{tpu_custom_call.1} parent=31 // pred_region
          %171 = dma.done %s164, 512
        $region36: #{tpu_custom_call.1} parent=31 // pred_fallthru
          _
        %p172 = pneg %p36
        %p173 = pneg %p33
        %p174 = pneg %p57
        %p175 = pneg %p54
        %s176 = sand.u32 %s70, 1
        %s177 = scalar_lea.sflag [#allocation4], %s176
        %s178 = sand.u32 %s70, 1
        %s179 = smul.addr %s178, 32
        %s180 = scalar_lea.vmem [#allocation3], %s179
        %p181 = pneg %p83
        %p182 = pneg %p80
        %p183 = pneg %p109
        %p184 = pneg %p106
        %s185 = sand.u32 %s96, 1
        %s186 = scalar_lea.sflag [#allocation5], %s185
        %s187 = sand.u32 %s96, 1
        %s188 = smul.addr %s187, 64
        %s189 = scalar_lea.vmem [#allocation6], %s188
        %s190 = smul.u32 2, %s20
        %s191 = smul.u32 2, %s20
        %v192 = vld [vmem:[%s167] sm:$0xff]
        %v193 = vld [vmem:[%s167 + $0x8] sm:$0xff]
        %v194 = vld [vmem:[%s1] sm:$0xff]
        %v195 = vld [vmem:[%s1 + $0x8] sm:$0xff]
        %s196 = scalar_lea.vmem %s167, 16 [#allocation3]
        %v197 = vld [vmem:[%s196] sm:$0xff]
        %v198 = vld [vmem:[%s196 + $0x8] sm:$0xff]
        %s199 = scalar_lea.vmem %s1, 16
        %v200 = vld [vmem:[%s199] sm:$0xff]
        %v201 = vld [vmem:[%s199 + $0x8] sm:$0xff]
        %vm202 = vcmask 130048
        %v204 = vsel %vm202, %v197, 0
        %v207 = vsel %vm202, %v198, 0
        %209 = vmatprep.subr.mxu0 0.0
        %210 = vmatpush1.msra.mxu0 %v200
        %211 = vmatprep.subr.mxu0 0.0
        %212 = vmatpush1.msra.mxu0 %v201
        %213 = vmatprep.subr.mxu0 0.0
        %214 = vmatpush1.msra.mxu0 0.0
        %215 = vmatprep.subr.mxu0 0.0
        %216 = vmatpush1.msra.mxu0 0.0
        %217 = vmatprep.subr.mxu0 0.0
        %218 = vmatpush1.msra.mxu0 0.0
        %219 = vmatprep.subr.mxu0 0.0
        %220 = vmatpush1.msra.mxu0 0.0
        %221 = vmatprep.subr.mxu0 0.0
        %222 = vmatpush1.msra.mxu0 0.0
        %223 = vmatprep.subr.mxu0 0.0
        %224 = vmatpush1.msra.mxu0 0.0
        %225 = vmatprep.subr.mxu0 0.0
        %226 = vmatpush1.msra.mxu0 0.0
        %227 = vmatprep.subr.mxu0 0.0
        %228 = vmatpush1.msra.mxu0 0.0
        %229 = vmatprep.subr.mxu0 0.0
        %230 = vmatpush1.msra.mxu0 0.0
        %231 = vmatprep.subr.mxu0 0.0
        %232 = vmatpush1.msra.mxu0 0.0
        %233 = vmatprep.subr.mxu0 0.0
        %234 = vmatpush1.msra.mxu0 0.0
        %235 = vmatprep.subr.mxu0 0.0
        %236 = vmatpush1.msra.mxu0 0.0
        %237 = vmatprep.subr.mxu0 0.0
        %238 = vmatpush1.msra.mxu0 0.0
        %239 = vmatprep.subr.mxu0 0.0
        %240 = vmatpush1.msra.mxu0 0.0
        %241 = vmatprep.subr.mxu0 0.0
        %242 = vmatpush1.msra.mxu0 0.0
        %243 = vmatprep.subr.mxu0 0.0
        %244 = vmatpush1.msra.mxu0 0.0
        %245 = vmatprep.subr.mxu0 0.0
        %246 = vmatpush1.msra.mxu0 0.0
        %247 = vmatprep.subr.mxu0 0.0
        %248 = vmatpush1.msra.mxu0 0.0
        %249 = vmatprep.subr.mxu0 0.0
        %250 = vmatpush1.msra.mxu0 0.0
        %251 = vmatprep.subr.mxu0 0.0
        %252 = vmatpush1.msra.mxu0 0.0
        %253 = vmatprep.subr.mxu0 0.0
        %254 = vmatpush1.msra.mxu0 0.0
        %255 = vmatprep.subr.mxu0 0.0
        %256 = vmatpush1.msra.mxu0 0.0
        %257 = vmatprep.subr.mxu0 0.0
        %258 = vmatpush1.msra.mxu0 0.0
        %259 = vmatprep.subr.mxu0 0.0
        %260 = vmatpush1.msra.mxu0 0.0
        %261 = vmatprep.subr.mxu0 0.0
        %262 = vmatpush1.msra.mxu0 0.0
        %263 = vmatprep.subr.mxu0 0.0
        %264 = vmatpush1.msra.mxu0 0.0
        %265 = vmatprep.subr.mxu0 0.0
        %266 = vmatpush1.msra.mxu0 0.0
        %267 = vmatprep.subr.mxu0 0.0
        %268 = vmatpush1.msra.mxu0 0.0
        %269 = vmatprep.subr.mxu0 0.0
        %270 = vmatpush1.msra.mxu0 0.0
        %271 = vmatprep.subr.mxu0 0.0
        %272 = vmatpush1.msra.mxu0 0.0
        %273 = vmatprep.mubr.f32.mxu0 0.0
        %274 = vmatmul.mubr.f32.gmra.mrb[0].mxu0 %v204
        %v275 = vpop.f32.mrb[0].mxu0
        %v276 = vadd.f32 0.0, %v275
        %v277 = vpop.f32.mrb[0].mxu0
        %278 = vmatprep.mubr.f32.mxu0 0.0
        %279 = vmatmul.mubr.f32.gmra.mrb[0].mxu0 %v207
        %v280 = vpop.f32.mrb[0].mxu0
        %v281 = vadd.f32 0.0, %v280
        %v282 = vpop.f32.mrb[0].mxu0
        %283 = vdwg.mxu0
        %v285 = vsel %vm202, %v192, 0
        %v288 = vsel %vm202, %v193, 0
        %290 = vmatprep.subr.mxu0 0.0
        %291 = vmatpush1.msra.mxu0 %v194
        %292 = vmatprep.subr.mxu0 0.0
        %293 = vmatpush1.msra.mxu0 %v195
        %294 = vmatprep.subr.mxu0 0.0
        %295 = vmatpush1.msra.mxu0 0.0
        %296 = vmatprep.subr.mxu0 0.0
        %297 = vmatpush1.msra.mxu0 0.0
        %298 = vmatprep.subr.mxu0 0.0
        %299 = vmatpush1.msra.mxu0 0.0
        %300 = vmatprep.subr.mxu0 0.0
        %301 = vmatpush1.msra.mxu0 0.0
        %302 = vmatprep.subr.mxu0 0.0
        %303 = vmatpush1.msra.mxu0 0.0
        %304 = vmatprep.subr.mxu0 0.0
        %305 = vmatpush1.msra.mxu0 0.0
        %306 = vmatprep.subr.mxu0 0.0
        %307 = vmatpush1.msra.mxu0 0.0
        %308 = vmatprep.subr.mxu0 0.0
        %309 = vmatpush1.msra.mxu0 0.0
        %310 = vmatprep.subr.mxu0 0.0
        %311 = vmatpush1.msra.mxu0 0.0
        %312 = vmatprep.subr.mxu0 0.0
        %313 = vmatpush1.msra.mxu0 0.0
        %314 = vmatprep.subr.mxu0 0.0
        %315 = vmatpush1.msra.mxu0 0.0
        %316 = vmatprep.subr.mxu0 0.0
        %317 = vmatpush1.msra.mxu0 0.0
        %318 = vmatprep.subr.mxu0 0.0
        %319 = vmatpush1.msra.mxu0 0.0
        %320 = vmatprep.subr.mxu0 0.0
        %321 = vmatpush1.msra.mxu0 0.0
        %322 = vmatprep.subr.mxu0 0.0
        %323 = vmatpush1.msra.mxu0 0.0
        %324 = vmatprep.subr.mxu0 0.0
        %325 = vmatpush1.msra.mxu0 0.0
        %326 = vmatprep.subr.mxu0 0.0
        %327 = vmatpush1.msra.mxu0 0.0
        %328 = vmatprep.subr.mxu0 0.0
        %329 = vmatpush1.msra.mxu0 0.0
        %330 = vmatprep.subr.mxu0 0.0
        %331 = vmatpush1.msra.mxu0 0.0
        %332 = vmatprep.subr.mxu0 0.0
        %333 = vmatpush1.msra.mxu0 0.0
        %334 = vmatprep.subr.mxu0 0.0
        %335 = vmatpush1.msra.mxu0 0.0
        %336 = vmatprep.subr.mxu0 0.0
        %337 = vmatpush1.msra.mxu0 0.0
        %338 = vmatprep.subr.mxu0 0.0
        %339 = vmatpush1.msra.mxu0 0.0
        %340 = vmatprep.subr.mxu0 0.0
        %341 = vmatpush1.msra.mxu0 0.0
        %342 = vmatprep.subr.mxu0 0.0
        %343 = vmatpush1.msra.mxu0 0.0
        %344 = vmatprep.subr.mxu0 0.0
        %345 = vmatpush1.msra.mxu0 0.0
        %346 = vmatprep.subr.mxu0 0.0
        %347 = vmatpush1.msra.mxu0 0.0
        %348 = vmatprep.subr.mxu0 0.0
        %349 = vmatpush1.msra.mxu0 0.0
        %350 = vmatprep.subr.mxu0 0.0
        %351 = vmatpush1.msra.mxu0 0.0
        %352 = vmatprep.subr.mxu0 0.0
        %353 = vmatpush1.msra.mxu0 0.0
        %354 = vmatprep.mubr.f32.mxu0 0.0
        %355 = vmatmul.mubr.f32.gmra.mrb[0].mxu0 %v285
        %v356 = vpop.f32.mrb[0].mxu0
        %v357 = vadd.f32 %v276, %v356
        %v358 = vpop.f32.mrb[0].mxu0
        %359 = vmatprep.mubr.f32.mxu0 0.0
        %360 = vmatmul.mubr.f32.gmra.mrb[0].mxu0 %v288
        %v361 = vpop.f32.mrb[0].mxu0
        %v362 = vadd.f32 %v281, %v361
        %v363 = vpop.f32.mrb[0].mxu0
        %364 = vdwg.mxu0
        %vm365 = vcmask 523264
        %366 = vst.msk [vmem:[#allocation2] sm:$0xff] %vm365, %v357
        %367 = vst.msk [vmem:[#allocation2 + $0x8] sm:$0xff] %vm365, %v362
        %v368 = vld [vmem:[%s0] sm:$0xff]
        %v369 = vld [vmem:[%s0 + $0x8] sm:$0xff]
        %v370 = vld [vmem:[%s0 + $0x10] sm:$0xff]
        %v371 = vld [vmem:[%s0 + $0x18] sm:$0xff]
        %v372 = vld [vmem:[#allocation2] sm:$0xff]
        %v373 = vld [vmem:[#allocation2 + $0x8] sm:$0xff]
        %v375 = vsel %vm202, %v368, 0
        %v378 = vsel %vm202, %v369, 0
        %v381 = vsel %vm202, %v370, 0
        %v384 = vsel %vm202, %v371, 0
        %386 = vmatprep.subr.mxu0 0.0
        %387 = vmatpush1.msra.mxu0 %v372
        %388 = vmatprep.subr.mxu0 0.0
        %389 = vmatpush1.msra.mxu0 %v373
        %390 = vmatprep.subr.mxu0 0.0
        %391 = vmatpush1.msra.mxu0 0.0
        %392 = vmatprep.subr.mxu0 0.0
        %393 = vmatpush1.msra.mxu0 0.0
        %394 = vmatprep.subr.mxu0 0.0
        %395 = vmatpush1.msra.mxu0 0.0
        %396 = vmatprep.subr.mxu0 0.0
        %397 = vmatpush1.msra.mxu0 0.0
        %398 = vmatprep.subr.mxu0 0.0
        %399 = vmatpush1.msra.mxu0 0.0
        %400 = vmatprep.subr.mxu0 0.0
        %401 = vmatpush1.msra.mxu0 0.0
        %402 = vmatprep.subr.mxu0 0.0
        %403 = vmatpush1.msra.mxu0 0.0
        %404 = vmatprep.subr.mxu0 0.0
        %405 = vmatpush1.msra.mxu0 0.0
        %406 = vmatprep.subr.mxu0 0.0
        %407 = vmatpush1.msra.mxu0 0.0
        %408 = vmatprep.subr.mxu0 0.0
        %409 = vmatpush1.msra.mxu0 0.0
        %410 = vmatprep.subr.mxu0 0.0
        %411 = vmatpush1.msra.mxu0 0.0
        %412 = vmatprep.subr.mxu0 0.0
        %413 = vmatpush1.msra.mxu0 0.0
        %414 = vmatprep.subr.mxu0 0.0
        %415 = vmatpush1.msra.mxu0 0.0
        %416 = vmatprep.subr.mxu0 0.0
        %417 = vmatpush1.msra.mxu0 0.0
        %418 = vmatprep.subr.mxu0 0.0
        %419 = vmatpush1.msra.mxu0 0.0
        %420 = vmatprep.subr.mxu0 0.0
        %421 = vmatpush1.msra.mxu0 0.0
        %422 = vmatprep.subr.mxu0 0.0
        %423 = vmatpush1.msra.mxu0 0.0
        %424 = vmatprep.subr.mxu0 0.0
        %425 = vmatpush1.msra.mxu0 0.0
        %426 = vmatprep.subr.mxu0 0.0
        %427 = vmatpush1.msra.mxu0 0.0
        %428 = vmatprep.subr.mxu0 0.0
        %429 = vmatpush1.msra.mxu0 0.0
        %430 = vmatprep.subr.mxu0 0.0
        %431 = vmatpush1.msra.mxu0 0.0
        %432 = vmatprep.subr.mxu0 0.0
        %433 = vmatpush1.msra.mxu0 0.0
        %434 = vmatprep.subr.mxu0 0.0
        %435 = vmatpush1.msra.mxu0 0.0
        %436 = vmatprep.subr.mxu0 0.0
        %437 = vmatpush1.msra.mxu0 0.0
        %438 = vmatprep.subr.mxu0 0.0
        %439 = vmatpush1.msra.mxu0 0.0
        %440 = vmatprep.subr.mxu0 0.0
        %441 = vmatpush1.msra.mxu0 0.0
        %442 = vmatprep.subr.mxu0 0.0
        %443 = vmatpush1.msra.mxu0 0.0
        %444 = vmatprep.subr.mxu0 0.0
        %445 = vmatpush1.msra.mxu0 0.0
        %446 = vmatprep.subr.mxu0 0.0
        %447 = vmatpush1.msra.mxu0 0.0
        %448 = vmatprep.subr.mxu0 0.0
        %449 = vmatpush1.msra.mxu0 0.0
        %450 = vmatprep.mubr.f32.mxu0 0.0
        %451 = vmatmul.mubr.f32.gmra.mrb[0].mxu0 %v375
        %v452 = vpop.f32.mrb[0].mxu0
        %v453 = vadd.f32 0.0, %v452
        %v454 = vpop.f32.mrb[0].mxu0
        %455 = vmatprep.mubr.f32.mxu0 0.0
        %456 = vmatmul.mubr.f32.gmra.mrb[0].mxu0 %v378
        %v457 = vpop.f32.mrb[0].mxu0
        %v458 = vadd.f32 0.0, %v457
        %v459 = vpop.f32.mrb[0].mxu0
        %460 = vmatprep.mubr.f32.mxu0 0.0
        %461 = vmatmul.mubr.f32.gmra.mrb[0].mxu0 %v381
        %v462 = vpop.f32.mrb[0].mxu0
        %v463 = vadd.f32 0.0, %v462
        %v464 = vpop.f32.mrb[0].mxu0
        %465 = vmatprep.mubr.f32.mxu0 0.0
        %466 = vmatmul.mubr.f32.gmra.mrb[0].mxu0 %v384
        %v467 = vpop.f32.mrb[0].mxu0
        %v468 = vadd.f32 0.0, %v467
        %v469 = vpop.f32.mrb[0].mxu0
        %470 = vdwg.mxu0
        %vm471 = vcmask 261120
        %472 = vst.msk [vmem:[%s189] sm:$0xff] %vm471, %v453
        %473 = vst.msk [vmem:[%s189 + $0x8] sm:$0xff] %vm471, %v458
        %474 = vst.msk [vmem:[%s189 + $0x10] sm:$0xff] %vm471, %v463
        %475 = vst.msk [vmem:[%s189 + $0x18] sm:$0xff] %vm471, %v468
        %480 = vrot.lane.b32.xlu0 %v453, 96
        %v481 = vpop.permute.xlu0 %480
        %482 = vrot.lane.b32.xlu0 %v458, 96
        %v483 = vpop.permute.xlu0 %482
        %484 = vrot.lane.b32.xlu0 %v463, 96
        %v485 = vpop.permute.xlu0 %484
        %486 = vrot.lane.b32.xlu0 %v468, 96
        %v487 = vpop.permute.xlu0 %486
        %s492 = scalar_lea.vmem %s189, 32 [#allocation6]
        %493 = vst.msk [vmem:[%s492] sm:$0xff] %vm471, %v481
        %494 = vst.msk [vmem:[%s492 + $0x8] sm:$0xff] %vm471, %v483
        %495 = vst.msk [vmem:[%s492 + $0x10] sm:$0xff] %vm471, %v485
        %496 = vst.msk [vmem:[%s492 + $0x18] sm:$0xff] %vm471, %v487
        %s497 = sand.u32 %s96, 1
        %s498 = scalar_lea.sflag [#allocation5], %s497
        %s499 = sand.u32 %s96, 1
        %s500 = smul.addr %s499, 64
        %s501 = scalar_lea.vmem [#allocation6], %s500
        // Predicated region
        $region37: #{tpu_custom_call.1} parent=31 // pred_check
          %p502 = pneg %p106
        $region38: #{tpu_custom_call.1} parent=31 // pred_check_branch
          %504 = sbr.rel (%p502) target = $region40
        $region39: #{tpu_custom_call.1} parent=31 // pred_region
          %s505 = smul.u32 2, %s20
          %s507 = ssub.s32 1024, 1024
          %508 = vsyncadd %s498, %s507
          %s509 = smul.addr %s505, 4
          %s510 = smul.addr %s509, 128
          %s511 = scalar_lea.hbm %s3, %s510
          %s512 = sshll.u32 %s501, 4
          %s513 = int_to_ptr.vmem [resolvable:$true] %s512
          %518 = dma.vmem_to_hbm [thread:$0]  %s513, 1024, %s511, %s498, 128, 128, 8
        $region40: #{tpu_custom_call.1} parent=31 // pred_fallthru
          _
      $region32: #{tpu_custom_call.1} parent=5 // pred_fallthru
        _
      %p519 = scmp.le.s32.totalorder 2, %s15
      // Predicated region
      $region41: #{tpu_custom_call.1} parent=5 // pred_check
        %p520 = pneg %p519
      $region42: #{tpu_custom_call.1} parent=5 // pred_check_branch
        %522 = sbr.rel (%p520) target = $region44
      $region43: #{tpu_custom_call.1} parent=5 // pred_region
        %s523 = ssub.s32 %s15, 2
        // Predicated region
        $region45: #{tpu_custom_call.1} parent=43 // pred_check
          %p524 = pneg %p112
        $region46: #{tpu_custom_call.1} parent=43 // pred_check_branch
          %526 = sbr.rel (%p524) target = $region48
        $region47: #{tpu_custom_call.1} parent=43 // pred_region
          %s527 = sand.u32 %s97, 1
          %s528 = scalar_lea.sflag [#allocation5], %s527
          %s529 = sand.u32 %s97, 1
          %s530 = smul.addr %s529, 64
          %s531 = scalar_lea.vmem [#allocation6], %s530
          %532 = dma.done %s528, 1024
        $region48: #{tpu_custom_call.1} parent=43 // pred_fallthru
          _
      $region44: #{tpu_custom_call.1} parent=5 // pred_fallthru
        _
    $region6: #{tpu_custom_call.1} parent=1 // loop_footer
      %s19 = sadd.s32 1, %s15
    $region7: #{tpu_custom_call.1} parent=1 // loop_footer_branch
      %14 = sbr.rel target = $region3
    $region8: #{tpu_custom_call.1} parent=1 // loop_exit
      _
    %533 = vsyncpa [#allocation4], 1
    %s534 = scalar_lea.sflag [#allocation4], 1
    %535 = vsyncpa %s534, 1
    %536 = vsyncpa [#allocation5], 1
    %s537 = scalar_lea.sflag [#allocation5], 1
    %538 = vsyncpa %s537, 1

</llo_original>
